<compile_context>
chip_gen: v6e
topology: v6e:2x2x1
jax: 0.10.0
libtpu: 0.0.40
codegen_flags: <defaults>
</compile_context>

<pallas_src>
import functools

import jax
import jax.numpy as jnp
from jax.experimental import pallas as pl
from jax.experimental.pallas import tpu as pltpu

IN_FEATURES = 784
NUM_CLASSES = 10
LANE = 128


def _round_up(n, m):
    return ((n + m - 1) // m) * m


def dnn_kernel(x_ref, w1_ref, w2_ref, o_ref):
    # x_ref:  (TILE_B, 784)  f32   (batch tile of flattened images, streamed as-is)
    # w1_ref: (784, Wp)      bf16  (fc1 weight transposed, hidden padded to Wp)
    # w2_ref: (Wp, 128)      bf16  (fc2 weight transposed, hidden + classes padded)
    # o_ref:  (TILE_B, 128)  f32   (softmax probs; cols >= 10 are zero padding)

    # In-kernel f32 -> bf16 cast (VPU work, hidden under the x DMA), then
    # fc1 + ReLU on the MXU with f32 accumulation.
    x = x_ref[...].astype(jnp.bfloat16)
    h = jnp.dot(x, w1_ref[...], preferred_element_type=jnp.float32)
    h = jnp.maximum(h, 0.0)

    # fc2 (bf16 MXU matmul, f32 accumulation) -> (TILE_B, 128) logits,
    # where columns >= NUM_CLASSES come from zero weight columns (logit == 0).
    logits = jnp.dot(h.astype(jnp.bfloat16), w2_ref[...],
                     preferred_element_type=jnp.float32)

    # Mask padded classes to -inf so exp(pad) == 0 and they don't pollute the
    # softmax max / denominator.
    col = jax.lax.broadcasted_iota(jnp.int32, logits.shape, 1)
    logits = jnp.where(col < NUM_CLASSES, logits, -jnp.inf)

    # Numerically-stable softmax over classes (dim=1).
    m = jnp.max(logits, axis=-1, keepdims=True)
    e = jnp.exp(logits - m)
    denom = jnp.sum(e, axis=-1, keepdims=True)
    inv = pl.reciprocal(denom, approx=True)      # EUP slot; divide would burn VALU
    o_ref[...] = (e * inv).astype(o_ref.dtype)


def prepare_params(w1, w2):
    """One-time weight prep (hoisted out of the per-call forward path).

    w1: (width, 784) fc1.weight, w2: (10, width) fc2.weight  (PyTorch layout).
    Returns:
      w1_t: (784, Wp)  bf16, hidden zero-padded to a multiple of 128 lanes.
      w2_t: (Wp, 128)  bf16, hidden rows zero-padded, classes zero-padded to 128
            so the kernel's output is lane-dense.
    Padding is exact: padded hidden units are x @ 0 = 0, ReLU(0) = 0, and padded
    class columns are masked to -inf before the softmax in the kernel.
    """
    width = w1.shape[0]
    wp = max(LANE, _round_up(width, LANE))
    cp = LANE  # padded class dim (lane-dense output)

    w1_t = jnp.transpose(w1).astype(jnp.bfloat16)    # (784, width)
    w2_t = jnp.transpose(w2).astype(jnp.bfloat16)    # (width, 10)
    w1_t = jnp.pad(w1_t, ((0, 0), (0, wp - width)))
    w2_t = jnp.pad(w2_t, ((0, wp - width), (0, cp - NUM_CLASSES)))
    return w1_t, w2_t


@functools.partial(jax.jit, static_argnames=("tile_b",))
def dnn_forward(x_nchw, w1_t, w2_t, tile_b=2048):
    """x_nchw: (B, 1, 28, 28) f32; w1_t/w2_t from prepare_params()."""
    B = x_nchw.shape[0]
    K = w1_t.shape[0]          # 784
    Wp = w1_t.shape[1]         # padded hidden width (multiple of 128)
    CP = w2_t.shape[1]         # padded class width (128)

    # Flatten (== torch.flatten(x, 1)).  No dtype cast here: x streams as f32
    # straight from HBM and is cast to bf16 inside the kernel.
    x = x_nchw.reshape(B, -1)

    # Batch tile: multiple of 8 (f32 sublane packing).  Default 2048 rows is
    # ~6.4 MiB per f32 buffer -> ~12.8 MiB double-buffered, comfortably inside
    # v7x's 64 MiB VMEM while amortizing the ~0.35 us per-step overhead.
    tb = _round_up(min(tile_b, B), 8)
    grid_b = pl.cdiv(B, tb)
    out_rows = grid_b * tb     # output allocation padded; ragged tail sliced off

    # Scoped VMEM sized from the actual tiles: double-buffered f32 x and f32 out,
    # resident bf16 weights, plus the (tb, Wp) f32 hidden temp (x2 margin).
    weight_bytes = (K * Wp + Wp * CP) * 2
    vmem_limit = int(2 * tb * K * 4           # x double buffer (f32)
                     + 2 * tb * CP * 4        # out double buffer (f32)
                     + weight_bytes
                     + 2 * tb * Wp * 4)       # hidden temp (f32) + slack
    vmem_limit = min(vmem_limit + (4 << 20), 48 << 20)   # headroom under v7x 64 MiB

    cost = pl.CostEstimate(
        flops=2 * out_rows * K * Wp + 2 * out_rows * Wp * CP,
        transcendentals=out_rows * (CP + 1),
        bytes_accessed=B * K * 4 + weight_bytes + out_rows * CP * 4,
    )

    out = pl.pallas_call(
        dnn_kernel,
        out_shape=jax.ShapeDtypeStruct((out_rows, CP), jnp.float32),
        grid=(grid_b,),
        in_specs=[
            pl.BlockSpec((tb, K), lambda i: (i, 0)),    # batch-tiled f32 x
            pl.BlockSpec((K, Wp), lambda i: (0, 0)),    # weights VMEM-resident
            pl.BlockSpec((Wp, CP), lambda i: (0, 0)),   # weights VMEM-resident
        ],
        out_specs=pl.BlockSpec((tb, CP), lambda i: (i, 0)),  # lane-dense (128) output
        compiler_params=pltpu.CompilerParams(
            dimension_semantics=("parallel",),   # megacore sharding on v7x
            vmem_limit_bytes=vmem_limit,
        ),
        cost_estimate=cost,
    )(x, w1_t, w2_t)

    # Drop ragged-tail rows and padded class columns.
    return out[:B, :NUM_CLASSES]


if __name__ == "__main__":
    batch = 2
    width = 32

    key = jax.random.PRNGKey(0)
    kx, k1, k2 = jax.random.split(key, 3)

    # MNIST-shaped input (NCHW) so flatten gives 784 features.
    x = jax.random.normal(kx, (batch, 1, 28, 28), dtype=jnp.float32)

    # Deterministic synthetic parameters (Kaiming-uniform-like scale), PyTorch layout.
    bound1 = 1.0 / (784.0 ** 0.5)
    bound2 = 1.0 / (float(width) ** 0.5)
    w1 = jax.random.uniform(k1, (width, 784), jnp.float32, -bound1, bound1)  # fc1.weight
    w2 = jax.random.uniform(k2, (10, width), jnp.float32, -bound2, bound2)   # fc2.weight

    # One-time weight prep (would live at model init in real use).
    w1_t, w2_t = prepare_params(w1, w2)

    out = dnn_forward(x, w1_t, w2_t)
    out = jax.block_until_ready(out)
    assert out.shape == (batch, 10)

    # Reference mirroring the kernel's bf16-matmul / f32-accumulate math.
    x_flat = x.reshape(batch, -1)
    xb = x_flat.astype(jnp.bfloat16)
    h_ref = jnp.maximum(
        jnp.dot(xb, w1.T.astype(jnp.bfloat16), preferred_element_type=jnp.float32), 0.0)
    logits_ref = jnp.dot(h_ref.astype(jnp.bfloat16), w2.T.astype(jnp.bfloat16),
                         preferred_element_type=jnp.float32)
    ref_bf16 = jax.nn.softmax(logits_ref, axis=1)
    assert jnp.allclose(out, ref_bf16, atol=2e-3, rtol=2e-3)
    assert jnp.allclose(jnp.sum(out, axis=1), 1.0, atol=2e-3)

    # Loose check against the exact f32 PyTorch-semantics forward.
    ref_f32 = jax.nn.softmax(jnp.maximum(x_flat @ w1.T, 0.0) @ w2.T, axis=1)
    assert jnp.allclose(out, ref_f32, atol=3e-2)

    print("KERNEL_OK")
</pallas_src>

<mosaic_0001>
module attributes {stable_mosaic.version = 11 : i64} {
  func.func @dnn_kernel(%arg0: i32, %arg1: memref<8x784xf32, #tpu.memory_space<vmem>>, %arg2: memref<784x128xbf16, #tpu.memory_space<vmem>>, %arg3: memref<128x128xbf16, #tpu.memory_space<vmem>>, %arg4: memref<8x128xf32, #tpu.memory_space<vmem>>) attributes {dimension_semantics = [#tpu.dimension_semantics<parallel>], iteration_bounds = array<i64: 1>, scalar_prefetch = 0 : i64, scratch_operands = 0 : i64, tpu.core_type = #tpu.core_type<tc>, window_params = [{transform_indices = @transform_0, window_bounds = array<i64: 8, 784>}, {pipeline_mode = #tpu.pipeline_mode<synchronous>, transform_indices = @transform_1, window_bounds = array<i64: 784, 128>}, {pipeline_mode = #tpu.pipeline_mode<synchronous>, transform_indices = @transform_2, window_bounds = array<i64: 128, 128>}, {transform_indices = @transform_3, window_bounds = array<i64: 8, 128>}]} {
    %c0 = arith.constant 0 : index
    %c0_0 = arith.constant 0 : index
    %0 = vector.load %arg1[%c0, %c0_0] : memref<8x784xf32, #tpu.memory_space<vmem>>, vector<8x784xf32>
    %1 = arith.truncf %0 : vector<8x784xf32> to vector<8x784xbf16>
    %c0_1 = arith.constant 0 : index
    %c0_2 = arith.constant 0 : index
    %2 = vector.load %arg2[%c0_1, %c0_2] : memref<784x128xbf16, #tpu.memory_space<vmem>>, vector<784x128xbf16>
    %cst = arith.constant dense<0.000000e+00> : vector<8x128xf32>
    %3 = tpu.matmul %1, %2, %cst {dimension_numbers = #tpu.dot_dimension_numbers<[1], [0], [0], [1], [0, 0, 1, 1], [], []>} : vector<8x784xbf16>, vector<784x128xbf16>, vector<8x128xf32> -> vector<8x128xf32>
    %cst_3 = arith.constant 0.000000e+00 : f32
    %4 = vector.broadcast %cst_3 : f32 to vector<8x128xf32>
    %5 = arith.maximumf %3, %4 : vector<8x128xf32>
    %6 = arith.truncf %5 : vector<8x128xf32> to vector<8x128xbf16>
    %c0_4 = arith.constant 0 : index
    %c0_5 = arith.constant 0 : index
    %7 = vector.load %arg3[%c0_4, %c0_5] : memref<128x128xbf16, #tpu.memory_space<vmem>>, vector<128x128xbf16>
    %cst_6 = arith.constant dense<0.000000e+00> : vector<8x128xf32>
    %8 = tpu.matmul %6, %7, %cst_6 {dimension_numbers = #tpu.dot_dimension_numbers<[1], [0], [0], [1], [0, 0, 1, 1], [], []>} : vector<8x128xbf16>, vector<128x128xbf16>, vector<8x128xf32> -> vector<8x128xf32>
    %9 = tpu.iota {dimensions = array<i32: 1>} : vector<8x128xi32>
    %c10_i32 = arith.constant 10 : i32
    %10 = vector.broadcast %c10_i32 : i32 to vector<8x128xi32>
    %11 = arith.cmpi slt, %9, %10 : vector<8x128xi32>
    %cst_7 = arith.constant 0xFF800000 : f32
    %12 = vector.broadcast %cst_7 : f32 to vector<8x128xf32>
    %13 = arith.select %11, %8, %12 : vector<8x128xi1>, vector<8x128xf32>
    %cst_8 = arith.constant dense<0xFF800000> : vector<8xf32>
    %14 = vector.multi_reduction <maximumf>, %13, %cst_8 [1] : vector<8x128xf32> to vector<8xf32>
    %15 = vector.shape_cast %14 : vector<8xf32> to vector<8x1xf32>
    %16 = vector.broadcast %15 : vector<8x1xf32> to vector<8x128xf32>
    %17 = arith.subf %13, %16 : vector<8x128xf32>
    %18 = math.exp %17 : vector<8x128xf32>
    %cst_9 = arith.constant dense<0.000000e+00> : vector<8xf32>
    %19 = vector.multi_reduction <add>, %18, %cst_9 [1] : vector<8x128xf32> to vector<8xf32>
    %20 = vector.shape_cast %19 : vector<8xf32> to vector<8x1xf32>
    %21 = tpu.reciprocal %20 {approx = true} : vector<8x1xf32> -> vector<8x1xf32>
    %22 = vector.broadcast %21 : vector<8x1xf32> to vector<8x128xf32>
    %23 = arith.mulf %18, %22 : vector<8x128xf32>
    %c0_10 = arith.constant 0 : index
    %c0_11 = arith.constant 0 : index
    %24 = vector.load %arg4[%c0_10, %c0_11] : memref<8x128xf32, #tpu.memory_space<vmem>>, vector<8x128xf32>
    tpu.vector_store %arg4[%c0_10, %c0_11], %23 {strides = array<i32>} : memref<8x128xf32, #tpu.memory_space<vmem>>, vector<8x128xf32>,
    return
  }
  func.func @transform_0(%arg0: i32) -> (i32, i32) {
    %c0_i32 = arith.constant 0 : i32
    %c0_i32_0 = arith.constant 0 : i32
    return %arg0, %c0_i32 : i32, i32
  }
  func.func @transform_1(%arg0: i32) -> (i32, i32) {
    %c0_i32 = arith.constant 0 : i32
    %c0_i32_0 = arith.constant 0 : i32
    %c0_i32_1 = arith.constant 0 : i32
    return %c0_i32, %c0_i32_0 : i32, i32
  }
  func.func @transform_2(%arg0: i32) -> (i32, i32) {
    %c0_i32 = arith.constant 0 : i32
    %c0_i32_0 = arith.constant 0 : i32
    %c0_i32_1 = arith.constant 0 : i32
    return %c0_i32, %c0_i32_0 : i32, i32
  }
  func.func @transform_3(%arg0: i32) -> (i32, i32) {
    %c0_i32 = arith.constant 0 : i32
    %c0_i32_0 = arith.constant 0 : i32
    return %arg0, %c0_i32 : i32, i32
  }
}

</mosaic_0001>

<llo_original>
// kernel: dnn_forward.1
$region0: #{dnn_forward.1}
  #allocation0 [shape = 'u32[]', space=smem, size = 0x4, offset = 0x4, fixed_abs, tag = 'smem constant byte address 0x4 - core index']
  #allocation1 [shape = 'u32[144,128]{1,0:T(1,128)}', space=vmem, size = 0x12000, scoped, tag = 'internal scratch']
  %s0 = inlined_call_operand.vmem [shape: f32[2,784], index: 0, kind: input, shape index: {}]
  %s1 = inlined_call_operand.hbm [shape: bf16[784,128], index: 1, kind: input, shape index: {}]
  %s2 = inlined_call_operand.vmem [shape: bf16[128,128], index: 2, kind: input, shape index: {}]
  %s3 = inlined_call_operand.vmem [shape: f32[8,128], index: 3, kind: output, shape index: {}]
  %s4 = sld [smem:[#allocation0]]
  $region26: #{dnn_forward.1} parent=0
    _
  %s6 = ssub.s32 1, %s4
  %s7 = scalar_select 0, %s6, %s4
  $region1: #{dnn_forward.1} parent=0
    #allocation2 [shape = 'u8[200704]{0}', space=vmem, size = 0x31000, scoped, tag = 'input window, operand 1, single buffered']
    #allocation3 [shape = 's32[1]{0}', space=sflag, size = 0x4, scoped, tag = 'scoped memory for dnn_forward.1']
    %8 = vsyncpa [#allocation3], 0
    // Predicated region
    $region2: #{dnn_forward.1} parent=1 // pred_check
      _
    $region3: #{dnn_forward.1} parent=1 // pred_check_branch
      %10 = sbr.rel (0) target = $region5
    $region4: #{dnn_forward.1} parent=1 // pred_region
      _
    $region5: #{dnn_forward.1} parent=1 // pred_fallthru
      _
    // Predicated region
    $region6: #{dnn_forward.1} parent=1 // pred_check
      _
    $region7: #{dnn_forward.1} parent=1 // pred_check_branch
      %12 = sbr.rel (0) target = $region9
    $region8: #{dnn_forward.1} parent=1 // pred_region
      %s14 = ssub.s32 6272, 6272
      %15 = vsyncadd [#allocation3], %s14
      %s16 = sshll.u32 [#allocation2], 4
      %s17 = int_to_ptr.vmem [resolvable:$true] %s16
      %22 = dma.hbm_to_vmem [thread:$0]  %s1, 6272, %s17, [#allocation3], 64, 64, 4
    $region9: #{dnn_forward.1} parent=1 // pred_fallthru
      _
    // Predicated region
    $region10: #{dnn_forward.1} parent=1 // pred_check
      _
    $region11: #{dnn_forward.1} parent=1 // pred_check_branch
      %24 = sbr.rel (0) target = $region13
    $region12: #{dnn_forward.1} parent=1 // pred_region
      _
    $region13: #{dnn_forward.1} parent=1 // pred_fallthru
      _
    // Predicated region
    $region14: #{dnn_forward.1} parent=1 // pred_check
      _
    $region15: #{dnn_forward.1} parent=1 // pred_check_branch
      %26 = sbr.rel (0) target = $region17
    $region16: #{dnn_forward.1} parent=1 // pred_region
      %27 = dma.done [#allocation3], 6272
    $region17: #{dnn_forward.1} parent=1 // pred_fallthru
      _
    %v29 = vld [vmem:[%s0] sm:$0xff]
    %v30 = vld [vmem:[%s0 + $0x8] sm:$0x3f]
    %v31 = vld [vmem:[%s0 + $0xe] sm:$0xff]
    %v32 = vld [vmem:[%s0 + $0x16] sm:$0x3f]
    %v33 = vld [vmem:[%s0 + $0x1c] sm:$0xff]
    %v34 = vld [vmem:[%s0 + $0x24] sm:$0x3f]
    %v35 = vld [vmem:[%s0 + $0x2a] sm:$0xff]
    %v36 = vld [vmem:[%s0 + $0x32] sm:$0x3f]
    %v45 = vcombine.low %v29, %v31
    %v46 = vcombine.high %v29, %v31
    %v47 = vcombine.low %v33, %v35
    %v48 = vcombine.high %v33, %v35
    %v50 = vunpack.c.l.s4 1983009808
    %v51 = vunpack.c.0.s8 %v50
    %v52 = vlaneseq
    %v53 = vshrl.u32 %v52, 7
    %v54 = vsub.s32 %v51, %v53
    %v55 = vrot.slane %v45, %v54
    %v57 = vunpack.c.l.s4 1983009808
    %v58 = vunpack.c.0.s8 %v57
    %v59 = vlaneseq
    %v60 = vshrl.u32 %v59, 7
    %v61 = vsub.s32 %v58, %v60
    %v62 = vrot.slane %v46, %v61
    %v64 = vunpack.c.l.s4 1983009808
    %v65 = vunpack.c.0.s8 %v64
    %v66 = vlaneseq
    %v67 = vshrl.u32 %v66, 7
    %v68 = vsub.s32 %v65, %v67
    %v69 = vrot.slane %v47, %v68
    %v71 = vunpack.c.l.s4 1983009808
    %v72 = vunpack.c.0.s8 %v71
    %v73 = vlaneseq
    %v74 = vshrl.u32 %v73, 7
    %v75 = vsub.s32 %v72, %v74
    %v76 = vrot.slane %v48, %v75
    %v77 = vcombine.low %v55, %v69
    %v78 = vcombine.high %v55, %v69
    %v79 = vcombine.low %v62, %v76
    %v80 = vcombine.high %v62, %v76
    %v81 = vcombine.low %v30, %v32
    %v82 = vcombine.high %v30, %v32
    %v83 = vcombine.low %v34, %v36
    %v84 = vcombine.high %v34, %v36
    %v86 = vunpack.c.l.s4 1983009808
    %v87 = vunpack.c.0.s8 %v86
    %v88 = vlaneseq
    %v89 = vshrl.u32 %v88, 7
    %v90 = vsub.s32 %v87, %v89
    %v91 = vrot.slane %v81, %v90
    %v93 = vunpack.c.l.s4 1983009808
    %v94 = vunpack.c.0.s8 %v93
    %v95 = vlaneseq
    %v96 = vshrl.u32 %v95, 7
    %v97 = vsub.s32 %v94, %v96
    %v98 = vrot.slane %v82, %v97
    %v100 = vunpack.c.l.s4 1983009808
    %v101 = vunpack.c.0.s8 %v100
    %v102 = vlaneseq
    %v103 = vshrl.u32 %v102, 7
    %v104 = vsub.s32 %v101, %v103
    %v105 = vrot.slane %v83, %v104
    %v107 = vunpack.c.l.s4 1983009808
    %v108 = vunpack.c.0.s8 %v107
    %v109 = vlaneseq
    %v110 = vshrl.u32 %v109, 7
    %v111 = vsub.s32 %v108, %v110
    %v112 = vrot.slane %v84, %v111
    %v113 = vcombine.low %v91, %v105
    %v114 = vcombine.high %v91, %v105
    %v115 = vcombine.low %v98, %v112
    %v123 = vpack.c.bf16 %v77, %v77
    %v124 = vpack.c.bf16 %v78, %v78
    %v125 = vpack.c.bf16 %v79, %v79
    %v126 = vpack.c.bf16 %v80, %v80
    %v127 = vpack.c.bf16 %v113, %v113
    %v128 = vpack.c.bf16 %v114, %v114
    %v129 = vpack.c.bf16 %v115, %v115
    %v130 = vld [vmem:[#allocation2] sm:$0xf]
    %v131 = vld [vmem:[#allocation2 + $0x4] sm:$0xf]
    %v132 = vld [vmem:[#allocation2 + $0x8] sm:$0xf]
    %v133 = vld [vmem:[#allocation2 + $0xc] sm:$0xf]
    %v134 = vld [vmem:[#allocation2 + $0x10] sm:$0xf]
    %v135 = vld [vmem:[#allocation2 + $0x14] sm:$0xf]
    %v136 = vld [vmem:[#allocation2 + $0x18] sm:$0xf]
    %v137 = vld [vmem:[#allocation2 + $0x1c] sm:$0xf]
    %v138 = vld [vmem:[#allocation2 + $0x20] sm:$0xf]
    %v139 = vld [vmem:[#allocation2 + $0x24] sm:$0xf]
    %v140 = vld [vmem:[#allocation2 + $0x28] sm:$0xf]
    %v141 = vld [vmem:[#allocation2 + $0x2c] sm:$0xf]
    %v142 = vld [vmem:[#allocation2 + $0x30] sm:$0xf]
    %v143 = vld [vmem:[#allocation2 + $0x34] sm:$0xf]
    %v144 = vld [vmem:[#allocation2 + $0x38] sm:$0xf]
    %v145 = vld [vmem:[#allocation2 + $0x3c] sm:$0xf]
    %v146 = vld [vmem:[#allocation2 + $0x40] sm:$0xf]
    %v147 = vld [vmem:[#allocation2 + $0x44] sm:$0xf]
    %v148 = vld [vmem:[#allocation2 + $0x48] sm:$0xf]
    %v149 = vld [vmem:[#allocation2 + $0x4c] sm:$0xf]
    %v150 = vld [vmem:[#allocation2 + $0x50] sm:$0xf]
    %v151 = vld [vmem:[#allocation2 + $0x54] sm:$0xf]
    %v152 = vld [vmem:[#allocation2 + $0x58] sm:$0xf]
    %v153 = vld [vmem:[#allocation2 + $0x5c] sm:$0xf]
    %v154 = vld [vmem:[#allocation2 + $0x60] sm:$0xf]
    %v155 = vld [vmem:[#allocation2 + $0x64] sm:$0xf]
    %v156 = vld [vmem:[#allocation2 + $0x68] sm:$0xf]
    %v157 = vld [vmem:[#allocation2 + $0x6c] sm:$0xf]
    %v158 = vld [vmem:[#allocation2 + $0x70] sm:$0xf]
    %v159 = vld [vmem:[#allocation2 + $0x74] sm:$0xf]
    %v160 = vld [vmem:[#allocation2 + $0x78] sm:$0xf]
    %v161 = vld [vmem:[#allocation2 + $0x7c] sm:$0xf]
    %v162 = vld [vmem:[#allocation2 + $0x80] sm:$0xf]
    %v163 = vld [vmem:[#allocation2 + $0x84] sm:$0xf]
    %v164 = vld [vmem:[#allocation2 + $0x88] sm:$0xf]
    %v165 = vld [vmem:[#allocation2 + $0x8c] sm:$0xf]
    %v166 = vld [vmem:[#allocation2 + $0x90] sm:$0xf]
    %v167 = vld [vmem:[#allocation2 + $0x94] sm:$0xf]
    %v168 = vld [vmem:[#allocation2 + $0x98] sm:$0xf]
    %v169 = vld [vmem:[#allocation2 + $0x9c] sm:$0xf]
    %v170 = vld [vmem:[#allocation2 + $0xa0] sm:$0xf]
    %v171 = vld [vmem:[#allocation2 + $0xa4] sm:$0xf]
    %v172 = vld [vmem:[#allocation2 + $0xa8] sm:$0xf]
    %v173 = vld [vmem:[#allocation2 + $0xac] sm:$0xf]
    %v174 = vld [vmem:[#allocation2 + $0xb0] sm:$0xf]
    %v175 = vld [vmem:[#allocation2 + $0xb4] sm:$0xf]
    %v176 = vld [vmem:[#allocation2 + $0xb8] sm:$0xf]
    %v177 = vld [vmem:[#allocation2 + $0xbc] sm:$0xf]
    %v178 = vld [vmem:[#allocation2 + $0xc0] sm:$0xf]
    %v179 = vld [vmem:[#allocation2 + $0xc4] sm:$0xf]
    %v180 = vld [vmem:[#allocation2 + $0xc8] sm:$0xf]
    %v181 = vld [vmem:[#allocation2 + $0xcc] sm:$0xf]
    %v182 = vld [vmem:[#allocation2 + $0xd0] sm:$0xf]
    %v183 = vld [vmem:[#allocation2 + $0xd4] sm:$0xf]
    %v184 = vld [vmem:[#allocation2 + $0xd8] sm:$0xf]
    %v185 = vld [vmem:[#allocation2 + $0xdc] sm:$0xf]
    %v186 = vld [vmem:[#allocation2 + $0xe0] sm:$0xf]
    %v187 = vld [vmem:[#allocation2 + $0xe4] sm:$0xf]
    %v188 = vld [vmem:[#allocation2 + $0xe8] sm:$0xf]
    %v189 = vld [vmem:[#allocation2 + $0xec] sm:$0xf]
    %v190 = vld [vmem:[#allocation2 + $0xf0] sm:$0xf]
    %v191 = vld [vmem:[#allocation2 + $0xf4] sm:$0xf]
    %v192 = vld [vmem:[#allocation2 + $0xf8] sm:$0xf]
    %v193 = vld [vmem:[#allocation2 + $0xfc] sm:$0xf]
    %v194 = vld [vmem:[#allocation2 + $0x100] sm:$0xf]
    %v195 = vld [vmem:[#allocation2 + $0x104] sm:$0xf]
    %v196 = vld [vmem:[#allocation2 + $0x108] sm:$0xf]
    %v197 = vld [vmem:[#allocation2 + $0x10c] sm:$0xf]
    %v198 = vld [vmem:[#allocation2 + $0x110] sm:$0xf]
    %v199 = vld [vmem:[#allocation2 + $0x114] sm:$0xf]
    %v200 = vld [vmem:[#allocation2 + $0x118] sm:$0xf]
    %v201 = vld [vmem:[#allocation2 + $0x11c] sm:$0xf]
    %v202 = vld [vmem:[#allocation2 + $0x120] sm:$0xf]
    %v203 = vld [vmem:[#allocation2 + $0x124] sm:$0xf]
    %v204 = vld [vmem:[#allocation2 + $0x128] sm:$0xf]
    %v205 = vld [vmem:[#allocation2 + $0x12c] sm:$0xf]
    %v206 = vld [vmem:[#allocation2 + $0x130] sm:$0xf]
    %v207 = vld [vmem:[#allocation2 + $0x134] sm:$0xf]
    %v208 = vld [vmem:[#allocation2 + $0x138] sm:$0xf]
    %v209 = vld [vmem:[#allocation2 + $0x13c] sm:$0xf]
    %v210 = vld [vmem:[#allocation2 + $0x140] sm:$0xf]
    %v211 = vld [vmem:[#allocation2 + $0x144] sm:$0xf]
    %v212 = vld [vmem:[#allocation2 + $0x148] sm:$0xf]
    %v213 = vld [vmem:[#allocation2 + $0x14c] sm:$0xf]
    %v214 = vld [vmem:[#allocation2 + $0x150] sm:$0xf]
    %v215 = vld [vmem:[#allocation2 + $0x154] sm:$0xf]
    %v216 = vld [vmem:[#allocation2 + $0x158] sm:$0xf]
    %v217 = vld [vmem:[#allocation2 + $0x15c] sm:$0xf]
    %v218 = vld [vmem:[#allocation2 + $0x160] sm:$0xf]
    %v219 = vld [vmem:[#allocation2 + $0x164] sm:$0xf]
    %v220 = vld [vmem:[#allocation2 + $0x168] sm:$0xf]
    %v221 = vld [vmem:[#allocation2 + $0x16c] sm:$0xf]
    %v222 = vld [vmem:[#allocation2 + $0x170] sm:$0xf]
    %v223 = vld [vmem:[#allocation2 + $0x174] sm:$0xf]
    %v224 = vld [vmem:[#allocation2 + $0x178] sm:$0xf]
    %v225 = vld [vmem:[#allocation2 + $0x17c] sm:$0xf]
    %v226 = vld [vmem:[#allocation2 + $0x180] sm:$0xf]
    %v227 = vld [vmem:[#allocation2 + $0x184] sm:$0xf]
    %v326 = vunpack.c.l.b16 %v130
    %v327 = vunpack.c.l.b16 %v131
    %v328 = vunpack.c.l.b16 %v132
    %v329 = vunpack.c.l.b16 %v133
    %v330 = vunpack.c.l.b16 %v134
    %v331 = vunpack.c.l.b16 %v135
    %v332 = vunpack.c.l.b16 %v136
    %v333 = vunpack.c.l.b16 %v137
    %v334 = vunpack.c.l.b16 %v138
    %v335 = vunpack.c.l.b16 %v139
    %v336 = vunpack.c.l.b16 %v140
    %v337 = vunpack.c.l.b16 %v141
    %v338 = vunpack.c.l.b16 %v142
    %v339 = vunpack.c.l.b16 %v143
    %v340 = vunpack.c.l.b16 %v144
    %v341 = vunpack.c.l.b16 %v145
    %v342 = vunpack.c.l.b16 %v146
    %v343 = vunpack.c.l.b16 %v147
    %v344 = vunpack.c.l.b16 %v148
    %v345 = vunpack.c.l.b16 %v149
    %v346 = vunpack.c.l.b16 %v150
    %v347 = vunpack.c.l.b16 %v151
    %v348 = vunpack.c.l.b16 %v152
    %v349 = vunpack.c.l.b16 %v153
    %v350 = vunpack.c.l.b16 %v154
    %v351 = vunpack.c.l.b16 %v155
    %v352 = vunpack.c.l.b16 %v156
    %v353 = vunpack.c.l.b16 %v157
    %v354 = vunpack.c.l.b16 %v158
    %v355 = vunpack.c.l.b16 %v159
    %v356 = vunpack.c.l.b16 %v160
    %v357 = vunpack.c.l.b16 %v161
    %v358 = vunpack.c.l.b16 %v162
    %v359 = vunpack.c.l.b16 %v163
    %v360 = vunpack.c.l.b16 %v164
    %v361 = vunpack.c.l.b16 %v165
    %v362 = vunpack.c.l.b16 %v166
    %v363 = vunpack.c.l.b16 %v167
    %v364 = vunpack.c.l.b16 %v168
    %v365 = vunpack.c.l.b16 %v169
    %v366 = vunpack.c.l.b16 %v170
    %v367 = vunpack.c.l.b16 %v171
    %v368 = vunpack.c.l.b16 %v172
    %v369 = vunpack.c.l.b16 %v173
    %v370 = vunpack.c.l.b16 %v174
    %v371 = vunpack.c.l.b16 %v175
    %v372 = vunpack.c.l.b16 %v176
    %v373 = vunpack.c.l.b16 %v177
    %v374 = vunpack.c.l.b16 %v178
    %v375 = vunpack.c.l.b16 %v179
    %v376 = vunpack.c.l.b16 %v180
    %v377 = vunpack.c.l.b16 %v181
    %v378 = vunpack.c.l.b16 %v182
    %v379 = vunpack.c.l.b16 %v183
    %v380 = vunpack.c.l.b16 %v184
    %v381 = vunpack.c.l.b16 %v185
    %v382 = vunpack.c.l.b16 %v186
    %v383 = vunpack.c.l.b16 %v187
    %v384 = vunpack.c.l.b16 %v188
    %v385 = vunpack.c.l.b16 %v189
    %v386 = vunpack.c.l.b16 %v190
    %v387 = vunpack.c.l.b16 %v191
    %v388 = vunpack.c.l.b16 %v192
    %v389 = vunpack.c.l.b16 %v193
    %v390 = vunpack.c.l.b16 %v194
    %v391 = vunpack.c.l.b16 %v195
    %v392 = vunpack.c.l.b16 %v196
    %v393 = vunpack.c.l.b16 %v197
    %v394 = vunpack.c.l.b16 %v198
    %v395 = vunpack.c.l.b16 %v199
    %v396 = vunpack.c.l.b16 %v200
    %v397 = vunpack.c.l.b16 %v201
    %v398 = vunpack.c.l.b16 %v202
    %v399 = vunpack.c.l.b16 %v203
    %v400 = vunpack.c.l.b16 %v204
    %v401 = vunpack.c.l.b16 %v205
    %v402 = vunpack.c.l.b16 %v206
    %v403 = vunpack.c.l.b16 %v207
    %v404 = vunpack.c.l.b16 %v208
    %v405 = vunpack.c.l.b16 %v209
    %v406 = vunpack.c.l.b16 %v210
    %v407 = vunpack.c.l.b16 %v211
    %v408 = vunpack.c.l.b16 %v212
    %v409 = vunpack.c.l.b16 %v213
    %v410 = vunpack.c.l.b16 %v214
    %v411 = vunpack.c.l.b16 %v215
    %v412 = vunpack.c.l.b16 %v216
    %v413 = vunpack.c.l.b16 %v217
    %v414 = vunpack.c.l.b16 %v218
    %v415 = vunpack.c.l.b16 %v219
    %v416 = vunpack.c.l.b16 %v220
    %v417 = vunpack.c.l.b16 %v221
    %v418 = vunpack.c.l.b16 %v222
    %v419 = vunpack.c.l.b16 %v223
    %v420 = vunpack.c.l.b16 %v224
    %v421 = vunpack.c.l.b16 %v225
    %v422 = vunpack.c.l.b16 %v226
    %v423 = vunpack.c.l.b16 %v227
    %v424 = vpack.c.b16 %v327, %v326
    %v425 = vpack.c.b16 %v329, %v328
    %v426 = vpack.c.b16 %v331, %v330
    %v427 = vpack.c.b16 %v333, %v332
    %v428 = vpack.c.b16 %v335, %v334
    %v429 = vpack.c.b16 %v337, %v336
    %v430 = vpack.c.b16 %v339, %v338
    %v431 = vpack.c.b16 %v341, %v340
    %v432 = vpack.c.b16 %v343, %v342
    %v433 = vpack.c.b16 %v345, %v344
    %v434 = vpack.c.b16 %v347, %v346
    %v435 = vpack.c.b16 %v349, %v348
    %v436 = vpack.c.b16 %v351, %v350
    %v437 = vpack.c.b16 %v353, %v352
    %v438 = vpack.c.b16 %v355, %v354
    %v439 = vpack.c.b16 %v357, %v356
    %v440 = vpack.c.b16 %v359, %v358
    %v441 = vpack.c.b16 %v361, %v360
    %v442 = vpack.c.b16 %v363, %v362
    %v443 = vpack.c.b16 %v365, %v364
    %v444 = vpack.c.b16 %v367, %v366
    %v445 = vpack.c.b16 %v369, %v368
    %v446 = vpack.c.b16 %v371, %v370
    %v447 = vpack.c.b16 %v373, %v372
    %v448 = vpack.c.b16 %v375, %v374
    %v449 = vpack.c.b16 %v377, %v376
    %v450 = vpack.c.b16 %v379, %v378
    %v451 = vpack.c.b16 %v381, %v380
    %v452 = vpack.c.b16 %v383, %v382
    %v453 = vpack.c.b16 %v385, %v384
    %v454 = vpack.c.b16 %v387, %v386
    %v455 = vpack.c.b16 %v389, %v388
    %v456 = vpack.c.b16 %v391, %v390
    %v457 = vpack.c.b16 %v393, %v392
    %v458 = vpack.c.b16 %v395, %v394
    %v459 = vpack.c.b16 %v397, %v396
    %v460 = vpack.c.b16 %v399, %v398
    %v461 = vpack.c.b16 %v401, %v400
    %v462 = vpack.c.b16 %v403, %v402
    %v463 = vpack.c.b16 %v405, %v404
    %v464 = vpack.c.b16 %v407, %v406
    %v465 = vpack.c.b16 %v409, %v408
    %v466 = vpack.c.b16 %v411, %v410
    %v467 = vpack.c.b16 %v413, %v412
    %v468 = vpack.c.b16 %v415, %v414
    %v469 = vpack.c.b16 %v417, %v416
    %v470 = vpack.c.b16 %v419, %v418
    %v471 = vpack.c.b16 %v421, %v420
    %v472 = vpack.c.b16 %v423, %v422
    %vm522 = vcmask 130048
    %v524 = vsel %vm522, %v129, 0
    %526 = vmatprep.subr.bf16.mxu0 0
    %527 = vmatpush1.bf16.msra.mxu0 %v431
    %528 = vmatprep.subr.bf16.mxu0 0
    %529 = vmatpush1.bf16.msra.mxu0 %v430
    %530 = vmatprep.subr.bf16.mxu0 0
    %531 = vmatpush1.bf16.msra.mxu0 %v429
    %532 = vmatprep.subr.bf16.mxu0 0
    %533 = vmatpush1.bf16.msra.mxu0 %v428
    %534 = vmatprep.subr.bf16.mxu0 0
    %535 = vmatpush1.bf16.msra.mxu0 %v427
    %536 = vmatprep.subr.bf16.mxu0 0
    %537 = vmatpush1.bf16.msra.mxu0 %v426
    %538 = vmatprep.subr.bf16.mxu0 0
    %539 = vmatpush1.bf16.msra.mxu0 %v425
    %540 = vmatprep.subr.bf16.mxu0 0
    %541 = vmatpush1.bf16.msra.mxu0 %v424
    %542 = vmatprep.subr.bf16.mxu0 0
    %543 = vmatpush2.bf16.msra.mxu0 %v439
    %544 = vmatprep.subr.bf16.mxu0 0
    %545 = vmatpush2.bf16.msra.mxu0 %v438
    %546 = vmatprep.subr.bf16.mxu0 0
    %547 = vmatpush2.bf16.msra.mxu0 %v437
    %548 = vmatprep.subr.bf16.mxu0 0
    %549 = vmatpush2.bf16.msra.mxu0 %v436
    %550 = vmatprep.subr.bf16.mxu0 0
    %551 = vmatpush2.bf16.msra.mxu0 %v435
    %552 = vmatprep.subr.bf16.mxu0 0
    %553 = vmatpush2.bf16.msra.mxu0 %v434
    %554 = vmatprep.subr.bf16.mxu0 0
    %555 = vmatpush2.bf16.msra.mxu0 %v433
    %556 = vmatprep.subr.bf16.mxu0 0
    %557 = vmatpush2.bf16.msra.mxu0 %v432
    %558 = vmatprep.mubr.bf16.mxu0 %v124
    %559 = vmatmul.mubr.bf16.gmra.mxu0 %v123
    %v560 = vpop.f32.mrf.mxu0
    %v561 = vadd.f32 0.0, %v560
    %v562 = vpop.f32.mrf.mxu0
    %v563 = vpop.f32.mrf.mxu0
    %v564 = vpop.f32.mrf.mxu0
    %565 = vdwg.mxu0
    %566 = vmatprep.subr.bf16.mxu0 0
    %567 = vmatpush1.bf16.msra.mxu0 %v447
    %568 = vmatprep.subr.bf16.mxu0 0
    %569 = vmatpush1.bf16.msra.mxu0 %v446
    %570 = vmatprep.subr.bf16.mxu0 0
    %571 = vmatpush1.bf16.msra.mxu0 %v445
    %572 = vmatprep.subr.bf16.mxu0 0
    %573 = vmatpush1.bf16.msra.mxu0 %v444
    %574 = vmatprep.subr.bf16.mxu0 0
    %575 = vmatpush1.bf16.msra.mxu0 %v443
    %576 = vmatprep.subr.bf16.mxu0 0
    %577 = vmatpush1.bf16.msra.mxu0 %v442
    %578 = vmatprep.subr.bf16.mxu0 0
    %579 = vmatpush1.bf16.msra.mxu0 %v441
    %580 = vmatprep.subr.bf16.mxu0 0
    %581 = vmatpush1.bf16.msra.mxu0 %v440
    %582 = vmatprep.subr.bf16.mxu0 0
    %583 = vmatpush2.bf16.msra.mxu0 %v455
    %584 = vmatprep.subr.bf16.mxu0 0
    %585 = vmatpush2.bf16.msra.mxu0 %v454
    %586 = vmatprep.subr.bf16.mxu0 0
    %587 = vmatpush2.bf16.msra.mxu0 %v453
    %588 = vmatprep.subr.bf16.mxu0 0
    %589 = vmatpush2.bf16.msra.mxu0 %v452
    %590 = vmatprep.subr.bf16.mxu0 0
    %591 = vmatpush2.bf16.msra.mxu0 %v451
    %592 = vmatprep.subr.bf16.mxu0 0
    %593 = vmatpush2.bf16.msra.mxu0 %v450
    %594 = vmatprep.subr.bf16.mxu0 0
    %595 = vmatpush2.bf16.msra.mxu0 %v449
    %596 = vmatprep.subr.bf16.mxu0 0
    %597 = vmatpush2.bf16.msra.mxu0 %v448
    %598 = vmatprep.mubr.bf16.mxu0 %v126
    %599 = vmatmul.mubr.bf16.gmra.mxu0 %v125
    %v600 = vpop.f32.mrf.mxu0
    %v601 = vadd.f32 %v561, %v600
    %v602 = vpop.f32.mrf.mxu0
    %v603 = vpop.f32.mrf.mxu0
    %v604 = vpop.f32.mrf.mxu0
    %605 = vdwg.mxu0
    %606 = vmatprep.subr.bf16.mxu0 0
    %607 = vmatpush1.bf16.msra.mxu0 %v463
    %608 = vmatprep.subr.bf16.mxu0 0
    %609 = vmatpush1.bf16.msra.mxu0 %v462
    %610 = vmatprep.subr.bf16.mxu0 0
    %611 = vmatpush1.bf16.msra.mxu0 %v461
    %612 = vmatprep.subr.bf16.mxu0 0
    %613 = vmatpush1.bf16.msra.mxu0 %v460
    %614 = vmatprep.subr.bf16.mxu0 0
    %615 = vmatpush1.bf16.msra.mxu0 %v459
    %616 = vmatprep.subr.bf16.mxu0 0
    %617 = vmatpush1.bf16.msra.mxu0 %v458
    %618 = vmatprep.subr.bf16.mxu0 0
    %619 = vmatpush1.bf16.msra.mxu0 %v457
    %620 = vmatprep.subr.bf16.mxu0 0
    %621 = vmatpush1.bf16.msra.mxu0 %v456
    %622 = vmatprep.subr.bf16.mxu0 0
    %623 = vmatpush2.bf16.msra.mxu0 %v471
    %624 = vmatprep.subr.bf16.mxu0 0
    %625 = vmatpush2.bf16.msra.mxu0 %v470
    %626 = vmatprep.subr.bf16.mxu0 0
    %627 = vmatpush2.bf16.msra.mxu0 %v469
    %628 = vmatprep.subr.bf16.mxu0 0
    %629 = vmatpush2.bf16.msra.mxu0 %v468
    %630 = vmatprep.subr.bf16.mxu0 0
    %631 = vmatpush2.bf16.msra.mxu0 %v467
    %632 = vmatprep.subr.bf16.mxu0 0
    %633 = vmatpush2.bf16.msra.mxu0 %v466
    %634 = vmatprep.subr.bf16.mxu0 0
    %635 = vmatpush2.bf16.msra.mxu0 %v465
    %636 = vmatprep.subr.bf16.mxu0 0
    %637 = vmatpush2.bf16.msra.mxu0 %v464
    %638 = vmatprep.mubr.bf16.mxu0 %v128
    %639 = vmatmul.mubr.bf16.gmra.mxu0 %v127
    %v640 = vpop.f32.mrf.mxu0
    %v641 = vadd.f32 %v601, %v640
    %v642 = vpop.f32.mrf.mxu0
    %v643 = vpop.f32.mrf.mxu0
    %v644 = vpop.f32.mrf.mxu0
    %645 = vdwg.mxu0
    %646 = vmatprep.subr.bf16.mxu0 0
    %647 = vmatpush1.bf16.msra.mxu0 0
    %648 = vmatprep.subr.bf16.mxu0 0
    %649 = vmatpush1.bf16.msra.mxu0 0
    %650 = vmatprep.subr.bf16.mxu0 0
    %651 = vmatpush1.bf16.msra.mxu0 0
    %652 = vmatprep.subr.bf16.mxu0 0
    %653 = vmatpush1.bf16.msra.mxu0 0
    %654 = vmatprep.subr.bf16.mxu0 0
    %655 = vmatpush1.bf16.msra.mxu0 0
    %656 = vmatprep.subr.bf16.mxu0 0
    %657 = vmatpush1.bf16.msra.mxu0 0
    %658 = vmatprep.subr.bf16.mxu0 0
    %659 = vmatpush1.bf16.msra.mxu0 0
    %660 = vmatprep.subr.bf16.mxu0 0
    %661 = vmatpush1.bf16.msra.mxu0 %v472
    %662 = vmatprep.subr.bf16.mxu0 0
    %663 = vmatpush2.bf16.msra.mxu0 0
    %664 = vmatprep.subr.bf16.mxu0 0
    %665 = vmatpush2.bf16.msra.mxu0 0
    %666 = vmatprep.subr.bf16.mxu0 0
    %667 = vmatpush2.bf16.msra.mxu0 0
    %668 = vmatprep.subr.bf16.mxu0 0
    %669 = vmatpush2.bf16.msra.mxu0 0
    %670 = vmatprep.subr.bf16.mxu0 0
    %671 = vmatpush2.bf16.msra.mxu0 0
    %672 = vmatprep.subr.bf16.mxu0 0
    %673 = vmatpush2.bf16.msra.mxu0 0
    %674 = vmatprep.subr.bf16.mxu0 0
    %675 = vmatpush2.bf16.msra.mxu0 0
    %676 = vmatprep.subr.bf16.mxu0 0
    %677 = vmatpush2.bf16.msra.mxu0 0
    %678 = vmatprep.mubr.bf16.mxu0 0
    %679 = vmatmul.mubr.bf16.gmra.mxu0 %v524
    %v680 = vpop.f32.mrf.mxu0
    %v681 = vadd.f32 %v641, %v680
    %v682 = vpop.f32.mrf.mxu0
    %v683 = vpop.f32.mrf.mxu0
    %v684 = vpop.f32.mrf.mxu0
    %685 = vdwg.mxu0
    %v686 = vmax.f32 %v681, 0.0
    %v687 = vpack.c.bf16 %v686, %v686
    %v688 = vld [vmem:[%s2] sm:$0xf]
    %v689 = vld [vmem:[%s2 + $0x4] sm:$0xf]
    %v690 = vld [vmem:[%s2 + $0x8] sm:$0xf]
    %v691 = vld [vmem:[%s2 + $0xc] sm:$0xf]
    %v692 = vld [vmem:[%s2 + $0x10] sm:$0xf]
    %v693 = vld [vmem:[%s2 + $0x14] sm:$0xf]
    %v694 = vld [vmem:[%s2 + $0x18] sm:$0xf]
    %v695 = vld [vmem:[%s2 + $0x1c] sm:$0xf]
    %v696 = vld [vmem:[%s2 + $0x20] sm:$0xf]
    %v697 = vld [vmem:[%s2 + $0x24] sm:$0xf]
    %v698 = vld [vmem:[%s2 + $0x28] sm:$0xf]
    %v699 = vld [vmem:[%s2 + $0x2c] sm:$0xf]
    %v700 = vld [vmem:[%s2 + $0x30] sm:$0xf]
    %v701 = vld [vmem:[%s2 + $0x34] sm:$0xf]
    %v702 = vld [vmem:[%s2 + $0x38] sm:$0xf]
    %v703 = vld [vmem:[%s2 + $0x3c] sm:$0xf]
    %v720 = vunpack.c.l.b16 %v688
    %v721 = vunpack.c.l.b16 %v689
    %v722 = vunpack.c.l.b16 %v690
    %v723 = vunpack.c.l.b16 %v691
    %v724 = vunpack.c.l.b16 %v692
    %v725 = vunpack.c.l.b16 %v693
    %v726 = vunpack.c.l.b16 %v694
    %v727 = vunpack.c.l.b16 %v695
    %v728 = vunpack.c.l.b16 %v696
    %v729 = vunpack.c.l.b16 %v697
    %v730 = vunpack.c.l.b16 %v698
    %v731 = vunpack.c.l.b16 %v699
    %v732 = vunpack.c.l.b16 %v700
    %v733 = vunpack.c.l.b16 %v701
    %v734 = vunpack.c.l.b16 %v702
    %v735 = vunpack.c.l.b16 %v703
    %v736 = vpack.c.b16 %v721, %v720
    %v737 = vpack.c.b16 %v723, %v722
    %v738 = vpack.c.b16 %v725, %v724
    %v739 = vpack.c.b16 %v727, %v726
    %v740 = vpack.c.b16 %v729, %v728
    %v741 = vpack.c.b16 %v731, %v730
    %v742 = vpack.c.b16 %v733, %v732
    %v743 = vpack.c.b16 %v735, %v734
    %752 = vmatprep.subr.bf16.mxu0 0
    %753 = vmatpush1.bf16.msra.mxu0 %v743
    %754 = vmatprep.subr.bf16.mxu0 0
    %755 = vmatpush1.bf16.msra.mxu0 %v742
    %756 = vmatprep.subr.bf16.mxu0 0
    %757 = vmatpush1.bf16.msra.mxu0 %v741
    %758 = vmatprep.subr.bf16.mxu0 0
    %759 = vmatpush1.bf16.msra.mxu0 %v740
    %760 = vmatprep.subr.bf16.mxu0 0
    %761 = vmatpush1.bf16.msra.mxu0 %v739
    %762 = vmatprep.subr.bf16.mxu0 0
    %763 = vmatpush1.bf16.msra.mxu0 %v738
    %764 = vmatprep.subr.bf16.mxu0 0
    %765 = vmatpush1.bf16.msra.mxu0 %v737
    %766 = vmatprep.subr.bf16.mxu0 0
    %767 = vmatpush1.bf16.msra.mxu0 %v736
    %768 = vmatprep.subr.bf16.mxu0 0
    %769 = vmatpush2.bf16.msra.mxu0 0
    %770 = vmatprep.subr.bf16.mxu0 0
    %771 = vmatpush2.bf16.msra.mxu0 0
    %772 = vmatprep.subr.bf16.mxu0 0
    %773 = vmatpush2.bf16.msra.mxu0 0
    %774 = vmatprep.subr.bf16.mxu0 0
    %775 = vmatpush2.bf16.msra.mxu0 0
    %776 = vmatprep.subr.bf16.mxu0 0
    %777 = vmatpush2.bf16.msra.mxu0 0
    %778 = vmatprep.subr.bf16.mxu0 0
    %779 = vmatpush2.bf16.msra.mxu0 0
    %780 = vmatprep.subr.bf16.mxu0 0
    %781 = vmatpush2.bf16.msra.mxu0 0
    %782 = vmatprep.subr.bf16.mxu0 0
    %783 = vmatpush2.bf16.msra.mxu0 0
    %784 = vmatprep.mubr.bf16.mxu0 0
    %785 = vmatmul.mubr.bf16.gmra.mxu0 %v687
    %v786 = vpop.f32.mrf.mxu0
    %v787 = vadd.f32 0.0, %v786
    %v788 = vpop.f32.mrf.mxu0
    %v789 = vpop.f32.mrf.mxu0
    %v790 = vpop.f32.mrf.mxu0
    %791 = vdwg.mxu0
    %v792 = vlaneseq
    %v793 = vand.u32 %v792, 127
    %vm794 = vcmp.lt.s32.totalorder %v793, 10
    %v795 = vsel %vm794, %v787, -inf
    %796 = vmax.xlane.f32.xlu0 %v795
    %v797 = vpop.xlane.xlu0 %796
    %v798 = vsub.f32 %v795, %v797
    %v799 = vmul.f32 %v798, 1.442695
    %v800 = vpow.pop %v799
    %801 = vadd.xlane.f32.xlu0 %v800
    %v802 = vpop.xlane.xlu0 %801
    %v803 = vrcp.pop %v802
    %v804 = vmul.f32 %v800, %v803
    %805 = vst [vmem:[%s3] sm:$0xff] %v804
    // Predicated region
    $region18: #{dnn_forward.1} parent=1 // pred_check
      _
    $region19: #{dnn_forward.1} parent=1 // pred_check_branch
      %807 = sbr.rel (0) target = $region21
    $region20: #{dnn_forward.1} parent=1 // pred_region
      _
    $region21: #{dnn_forward.1} parent=1 // pred_fallthru
      _
    // Predicated region
    $region22: #{dnn_forward.1} parent=1 // pred_check
      _
    $region23: #{dnn_forward.1} parent=1 // pred_check_branch
      %809 = sbr.rel (0) target = $region25
    $region24: #{dnn_forward.1} parent=1 // pred_region
      _
    $region25: #{dnn_forward.1} parent=1 // pred_fallthru
      _
    %810 = vsyncpa [#allocation3], 1

</llo_original>
